<compile_context>
chip_gen: v7x
topology: tpu7x:2x2x1
jax: 0.10.0
libtpu: 0.0.40
codegen_flags: <defaults>
</compile_context>

<pallas_src>
import functools

import jax
import jax.numpy as jnp
from jax.experimental import pallas as pl
from jax.experimental.pallas import tpu as pltpu

ALPHA = 0.25
GAMMA = 2.0  # gamma == 2.0 -> exact square inside the kernel (no pow path)
SMOOTH = 0.0001


def _focal_kernel(o_ref, t_ref, acc_ref, *, tile_rows, rows_total, need_mask):
    s = pl.program_id(1)

    @pl.when(s == 0)
    def _():
        acc_ref[...] = jnp.zeros_like(acc_ref)

    o = o_ref[...].astype(jnp.float32)
    t = t_ref[...].astype(jnp.float32)

    is_pos = t == 1.0
    alpha_factor = jnp.where(is_pos, ALPHA, 1.0 - ALPHA)
    fw = jnp.where(is_pos, 1.0 - o, o)
    fw = alpha_factor * (fw * fw)  # gamma == 2.0
    # Two-log form kept on purpose: exactly matches the module for soft targets.
    bce = -(t * jnp.log(o + SMOOTH) + (1.0 - t) * jnp.log(1.0 - o + SMOOTH))
    loss = fw * bce

    if need_mask:
        # Mask rows past the real extent (ragged last tile / clamped duplicate
        # tiles read stale VMEM; their contribution is forced to exactly 0).
        p = pl.program_id(0)
        steps = pl.num_programs(1)
        start_row = (p * steps + s) * tile_rows
        row_ids = jax.lax.broadcasted_iota(jnp.int32, loss.shape, 0) + start_row
        loss = jnp.where(row_ids < rows_total, loss, 0.0)

    r, lw = loss.shape
    if r % 8 == 0:
        # Pure VPU (vreg-wise) folds down to an (8, lane_w) partial.
        partial = jnp.sum(loss.reshape(r // 8, 8, lw), axis=0)
    else:
        # Small full-array block (rows < 8): keep it as-is, reduce outside.
        partial = loss
    acc_ref[...] += partial


def focal_loss(outputs, targets, *, lane_w=512, tile_rows=512, num_parallel=2):
    """Pallas equivalent of FocalLoss.forward. Returns a scalar float32.

    Valid because every channel has the same element count, so the mean of
    per-channel means equals the global mean over all elements.
    """
    assert outputs.shape == targets.shape
    total = outputs.size
    o = outputs.reshape(-1)
    t = targets.reshape(-1)

    # Pick a lane width (multiple of 128) that divides the element count so we
    # avoid a host-side pad (full HBM copy) in the common case.
    lw = lane_w
    if total % lw != 0:
        for cand in (512, 256, 128):
            if total % cand == 0:
                lw = cand
                break
        else:
            lw = 128
    pad = (-total) % lw
    if pad:
        # Zero padding contributes exactly 0 (focal_weight == 0); only hit for
        # element counts not divisible by 128.
        o = jnp.pad(o, (0, pad))
        t = jnp.pad(t, (0, pad))

    rows = (total + pad) // lw
    o = o.reshape(rows, lw)
    t = t.reshape(rows, lw)

    # Tile rows: big (default 512 -> 1 MiB f32 blocks), multiple of 8, or the
    # full row extent for small problems (full-dim blocks are always legal).
    tr = min(tile_rows, rows)
    if tr != rows:
        tr = max(8, (tr // 8) * 8)
    num_row_tiles = pl.cdiv(rows, tr)
    p_dim = max(1, min(num_parallel, num_row_tiles))
    steps = pl.cdiv(num_row_tiles, p_dim)
    acc_rows = 8 if tr % 8 == 0 else tr
    need_mask = (rows % tr != 0) or (p_dim * steps != num_row_tiles)

    last_tile = num_row_tiles - 1

    def in_map(p, s):
        # Clamp so no block starts fully outside the array; duplicated tiles
        # are fully masked inside the kernel.
        return (jnp.minimum(p * steps + s, last_tile), 0)

    kernel = functools.partial(
        _focal_kernel, tile_rows=tr, rows_total=rows, need_mask=need_mask)

    partials = pl.pallas_call(
        kernel,
        out_shape=jax.ShapeDtypeStruct((p_dim, acc_rows, lw), jnp.float32),
        grid_spec=pltpu.PrefetchScalarGridSpec(
            num_scalar_prefetch=0,
            grid=(p_dim, steps),
            in_specs=[
                pl.BlockSpec((tr, lw), in_map),
                pl.BlockSpec((tr, lw), in_map),
            ],
            out_specs=pl.BlockSpec((None, acc_rows, lw), lambda p, s: (p, 0, 0)),
        ),
        compiler_params=pltpu.CompilerParams(
            dimension_semantics=("parallel", "arbitrary")),
    )(o, t)

    # Tiny final reduction (p_dim * acc_rows * lw floats) in XLA.
    return jnp.sum(partials) / jnp.float32(total)


def _focal_loss_ref(outputs, targets):
    """Pure-JAX reference mirroring the PyTorch module exactly."""
    if outputs.ndim > 2:
        n, c = outputs.shape[0], outputs.shape[1]
        outputs = outputs.reshape(n, c, -1).transpose(0, 2, 1).reshape(-1, c)
        targets = targets.reshape(n, c, -1).transpose(0, 2, 1).reshape(-1, c)
    chan_losses = []
    for ch in range(outputs.shape[1]):
        o = outputs[:, ch]
        t = targets[:, ch]
        alpha_factor = jnp.where(t == 1.0, ALPHA, 1.0 - ALPHA)
        fw = jnp.where(t == 1.0, 1.0 - o, o)
        fw = alpha_factor * jnp.power(fw, GAMMA)
        bce = -(t * jnp.log(o + SMOOTH) + (1.0 - t) * jnp.log(1.0 - o + SMOOTH))
        chan_losses.append(jnp.mean(fw * bce))
    return jnp.mean(jnp.stack(chan_losses))


if __name__ == "__main__":
    key = jax.random.PRNGKey(0)
    k1, k2, k3, k4 = jax.random.split(key, 4)

    # Main test — NCHW: batch=2, channels=4, spatial=16x16 (probabilities in,
    # binary masks as targets, matching the module's contract).
    x_shape = (2, 4, 16, 16)
    outputs = jax.nn.sigmoid(jax.random.normal(k1, x_shape, dtype=jnp.float32))
    targets = (jax.random.uniform(k2, x_shape) > 0.5).astype(jnp.float32)

    loss = jax.block_until_ready(focal_loss(outputs, targets))
    ref = jax.block_until_ready(_focal_loss_ref(outputs, targets))
    assert jnp.isfinite(loss), "loss is not finite"
    assert jnp.allclose(loss, ref, rtol=1e-5, atol=1e-6), (loss, ref)

    # Second check: exercises the multi-tile path with a ragged (masked) last
    # row-tile and the 2-way parallel grid axis.
    x_shape2 = (2, 4, 24, 24)
    outputs2 = jax.nn.sigmoid(jax.random.normal(k3, x_shape2, dtype=jnp.float32))
    targets2 = (jax.random.uniform(k4, x_shape2) > 0.5).astype(jnp.float32)
    loss2 = jax.block_until_ready(
        focal_loss(outputs2, targets2, tile_rows=8, num_parallel=2))
    ref2 = jax.block_until_ready(_focal_loss_ref(outputs2, targets2))
    assert jnp.isfinite(loss2), "loss2 is not finite"
    assert jnp.allclose(loss2, ref2, rtol=1e-5, atol=1e-6), (loss2, ref2)

    print("KERNEL_OK")
</pallas_src>

<mosaic_0001>
module attributes {stable_mosaic.version = 11 : i64} {
  func.func @_focal_kernel(%arg0: i32, %arg1: i32, %arg2: memref<4x512xf32, #tpu.memory_space<vmem>>, %arg3: memref<4x512xf32, #tpu.memory_space<vmem>>, %arg4: memref<1x4x512xf32, #tpu.memory_space<vmem>>) attributes {dimension_semantics = [#tpu.dimension_semantics<parallel>, #tpu.dimension_semantics<arbitrary>], iteration_bounds = array<i64: 1, 1>, scalar_prefetch = 0 : i64, scratch_operands = 0 : i64, tpu.core_type = #tpu.core_type<tc>, window_params = [{transform_indices = @transform_0, window_bounds = array<i64: 4, 512>}, {transform_indices = @transform_1, window_bounds = array<i64: 4, 512>}, {transform_indices = @transform_2, window_bounds = array<i64: 1, 4, 512>}]} {
    %c0_i32 = arith.constant 0 : i32
    %0 = arith.cmpi eq, %arg1, %c0_i32 : i32
    %1 = arith.extui %0 : i1 to i32
    %c0_i32_0 = arith.constant 0 : i32
    %2 = arith.cmpi ne, %1, %c0_i32_0 : i32
    scf.if %2 {
      %cst_18 = arith.constant 0.000000e+00 : f32
      %37 = vector.broadcast %cst_18 : f32 to vector<4x512xf32>
      %c0_19 = arith.constant 0 : index
      %c0_20 = arith.constant 0 : index
      %c0_21 = arith.constant 0 : index
      %38 = vector.load %arg4[%c0_19, %c0_20, %c0_21] : memref<1x4x512xf32, #tpu.memory_space<vmem>>, vector<1x4x512xf32>
      %39 = vector.shape_cast %38 : vector<1x4x512xf32> to vector<4x512xf32>
      %40 = vector.shape_cast %37 : vector<4x512xf32> to vector<1x4x512xf32>
      tpu.vector_store %arg4[%c0_19, %c0_20, %c0_21], %40 {strides = array<i32>} : memref<1x4x512xf32, #tpu.memory_space<vmem>>, vector<1x4x512xf32>,
    } else {
    }
    %c0 = arith.constant 0 : index
    %c0_1 = arith.constant 0 : index
    %3 = vector.load %arg2[%c0, %c0_1] : memref<4x512xf32, #tpu.memory_space<vmem>>, vector<4x512xf32>
    %c0_2 = arith.constant 0 : index
    %c0_3 = arith.constant 0 : index
    %4 = vector.load %arg3[%c0_2, %c0_3] : memref<4x512xf32, #tpu.memory_space<vmem>>, vector<4x512xf32>
    %cst = arith.constant 1.000000e+00 : f32
    %5 = vector.broadcast %cst : f32 to vector<4x512xf32>
    %6 = arith.cmpf oeq, %4, %5 : vector<4x512xf32>
    %cst_4 = arith.constant 2.500000e-01 : f32
    %cst_5 = arith.constant 7.500000e-01 : f32
    %7 = vector.broadcast %cst_4 : f32 to vector<4x512xf32>
    %8 = vector.broadcast %cst_5 : f32 to vector<4x512xf32>
    %9 = arith.select %6, %7, %8 : vector<4x512xi1>, vector<4x512xf32>
    %cst_6 = arith.constant 1.000000e+00 : f32
    %10 = vector.broadcast %cst_6 : f32 to vector<4x512xf32>
    %11 = arith.subf %10, %3 : vector<4x512xf32>
    %12 = arith.select %6, %11, %3 : vector<4x512xi1>, vector<4x512xf32>
    %13 = arith.mulf %12, %12 : vector<4x512xf32>
    %14 = arith.mulf %9, %13 : vector<4x512xf32>
    %cst_7 = arith.constant 9.99999974E-5 : f32
    %15 = vector.broadcast %cst_7 : f32 to vector<4x512xf32>
    %16 = arith.addf %3, %15 : vector<4x512xf32>
    %17 = math.log %16 : vector<4x512xf32>
    %18 = arith.mulf %4, %17 : vector<4x512xf32>
    %cst_8 = arith.constant 1.000000e+00 : f32
    %19 = vector.broadcast %cst_8 : f32 to vector<4x512xf32>
    %20 = arith.subf %19, %4 : vector<4x512xf32>
    %cst_9 = arith.constant 1.000000e+00 : f32
    %21 = vector.broadcast %cst_9 : f32 to vector<4x512xf32>
    %22 = arith.subf %21, %3 : vector<4x512xf32>
    %cst_10 = arith.constant 9.99999974E-5 : f32
    %23 = vector.broadcast %cst_10 : f32 to vector<4x512xf32>
    %24 = arith.addf %22, %23 : vector<4x512xf32>
    %25 = math.log %24 : vector<4x512xf32>
    %26 = arith.mulf %20, %25 : vector<4x512xf32>
    %27 = arith.addf %18, %26 : vector<4x512xf32>
    %cst_11 = arith.constant 0.000000e+00 : f32
    %28 = vector.broadcast %cst_11 : f32 to vector<4x512xf32>
    %29 = arith.subf %28, %27 : vector<4x512xf32>
    %30 = arith.mulf %14, %29 : vector<4x512xf32>
    %c0_12 = arith.constant 0 : index
    %c0_13 = arith.constant 0 : index
    %c0_14 = arith.constant 0 : index
    %31 = vector.load %arg4[%c0_12, %c0_13, %c0_14] : memref<1x4x512xf32, #tpu.memory_space<vmem>>, vector<1x4x512xf32>
    %32 = vector.shape_cast %31 : vector<1x4x512xf32> to vector<4x512xf32>
    %33 = arith.addf %32, %30 : vector<4x512xf32>
    %c0_15 = arith.constant 0 : index
    %c0_16 = arith.constant 0 : index
    %c0_17 = arith.constant 0 : index
    %34 = vector.load %arg4[%c0_15, %c0_16, %c0_17] : memref<1x4x512xf32, #tpu.memory_space<vmem>>, vector<1x4x512xf32>
    %35 = vector.shape_cast %34 : vector<1x4x512xf32> to vector<4x512xf32>
    %36 = vector.shape_cast %33 : vector<4x512xf32> to vector<1x4x512xf32>
    tpu.vector_store %arg4[%c0_15, %c0_16, %c0_17], %36 {strides = array<i32>} : memref<1x4x512xf32, #tpu.memory_space<vmem>>, vector<1x4x512xf32>,
    return
  }
  func.func @transform_0(%arg0: i32, %arg1: i32) -> (i32, i32) {
    %c1_i32 = arith.constant 1 : i32
    %0 = arith.muli %arg0, %c1_i32 : i32
    %1 = arith.addi %0, %arg1 : i32
    %c0_i32 = arith.constant 0 : i32
    %2 = arith.minsi %1, %c0_i32 : i32
    %c0_i32_0 = arith.constant 0 : i32
    %c0_i32_1 = arith.constant 0 : i32
    return %2, %c0_i32_0 : i32, i32
  }
  func.func @transform_1(%arg0: i32, %arg1: i32) -> (i32, i32) {
    %c1_i32 = arith.constant 1 : i32
    %0 = arith.muli %arg0, %c1_i32 : i32
    %1 = arith.addi %0, %arg1 : i32
    %c0_i32 = arith.constant 0 : i32
    %2 = arith.minsi %1, %c0_i32 : i32
    %c0_i32_0 = arith.constant 0 : i32
    %c0_i32_1 = arith.constant 0 : i32
    return %2, %c0_i32_0 : i32, i32
  }
  func.func @transform_2(%arg0: i32, %arg1: i32) -> (i32, i32, i32) {
    %c0_i32 = arith.constant 0 : i32
    %c0_i32_0 = arith.constant 0 : i32
    %c0_i32_1 = arith.constant 0 : i32
    return %arg0, %c0_i32, %c0_i32_0 : i32, i32, i32
  }
}

</mosaic_0001>

<llo_original>
// kernel: tpu_custom_call.1
$region0: #{tpu_custom_call.1}
  #allocation0 [shape = 'u32[]', space=smem, size = 0x4, offset = 0x4, fixed_abs, tag = 'smem constant byte address 0x4 - core index']
  #allocation1 [shape = 'u32[144,128]{1,0:T(1,128)}', space=vmem, size = 0x12000, scoped, tag = 'internal scratch']
  %s0 = inlined_call_operand.hbm [shape: f32[4,512], index: 0, kind: input, shape index: {}]
  %s1 = inlined_call_operand.hbm [shape: f32[4,512], index: 1, kind: input, shape index: {}]
  %s2 = inlined_call_operand.hbm [shape: f32[1,4,512], index: 2, kind: output, shape index: {}]
  %s3 = sld [smem:[#allocation0]]
  $region30: #{tpu_custom_call.1} parent=0
    _
  %s5 = ssub.s32 1, %s3
  %s6 = scalar_select 0, %s5, %s3
  $region1: #{tpu_custom_call.1} parent=0
    #allocation2 [shape = 'u8[8192]{0}', space=vmem, size = 0x2000, scoped, tag = 'input window, operand 0, single buffered']
    #allocation3 [shape = 's32[1]{0}', space=sflag, size = 0x4, scoped, tag = 'scoped memory for tpu_custom_call.1']
    #allocation4 [shape = 's32[1]{0}', space=sflag, size = 0x4, scoped, tag = 'scoped memory for tpu_custom_call.1']
    #allocation5 [shape = 'u8[8192]{0}', space=vmem, size = 0x2000, scoped, tag = 'input window, operand 1, single buffered']
    #allocation6 [shape = 's32[1]{0}', space=sflag, size = 0x4, scoped, tag = 'scoped memory for tpu_custom_call.1']
    #allocation7 [shape = 'u8[8192]{0}', space=vmem, size = 0x2000, scoped, tag = 'output window, operand 0, single buffered']
    %7 = vsyncpa [#allocation3], 0
    %8 = vsyncpa [#allocation6], 0
    %9 = vsyncpa [#allocation4], 0
    // Predicated region
    $region2: #{tpu_custom_call.1} parent=1 // pred_check
      _
    $region3: #{tpu_custom_call.1} parent=1 // pred_check_branch
      %11 = sbr.rel (0) target = $region5
    $region4: #{tpu_custom_call.1} parent=1 // pred_region
      %s12 = sadd.s32 0, 0
      %p13 = scmp.lt.s32.totalorder %s12, 0
      %s14 = scalar_select %p13, %s12, 0
      %s16 = ssub.s32 256, 256
      %17 = vsyncadd [#allocation3], %s16
      %s18 = smul.addr %s14, 4
      %s19 = smul.addr %s18, 64
      %s20 = scalar_lea.hbm %s0, %s19
      %s22 = sshll.u32 [#allocation2], 4
      %s23 = int_to_ptr.vmem [resolvable:$true] %s22
      %25 = dma.hbm_to_vmem [thread:$0]  %s20, 256, %s23, [#allocation3]
    $region5: #{tpu_custom_call.1} parent=1 // pred_fallthru
      _
    // Predicated region
    $region6: #{tpu_custom_call.1} parent=1 // pred_check
      _
    $region7: #{tpu_custom_call.1} parent=1 // pred_check_branch
      %27 = sbr.rel (0) target = $region9
    $region8: #{tpu_custom_call.1} parent=1 // pred_region
      %s28 = sadd.s32 0, 0
      %p29 = scmp.lt.s32.totalorder %s28, 0
      %s30 = scalar_select %p29, %s28, 0
      %s32 = ssub.s32 256, 256
      %33 = vsyncadd [#allocation6], %s32
      %s34 = smul.addr %s30, 4
      %s35 = smul.addr %s34, 64
      %s36 = scalar_lea.hbm %s1, %s35
      %s38 = sshll.u32 [#allocation5], 4
      %s39 = int_to_ptr.vmem [resolvable:$true] %s38
      %41 = dma.hbm_to_vmem [thread:$0]  %s36, 256, %s39, [#allocation6]
    $region9: #{tpu_custom_call.1} parent=1 // pred_fallthru
      _
    // Predicated region
    $region10: #{tpu_custom_call.1} parent=1 // pred_check
      _
    $region11: #{tpu_custom_call.1} parent=1 // pred_check_branch
      %43 = sbr.rel (0) target = $region13
    $region12: #{tpu_custom_call.1} parent=1 // pred_region
      %44 = dma.done [#allocation3], 256
    $region13: #{tpu_custom_call.1} parent=1 // pred_fallthru
      _
    // Predicated region
    $region14: #{tpu_custom_call.1} parent=1 // pred_check
      _
    $region15: #{tpu_custom_call.1} parent=1 // pred_check_branch
      %46 = sbr.rel (0) target = $region17
    $region16: #{tpu_custom_call.1} parent=1 // pred_region
      %47 = dma.done [#allocation6], 256
    $region17: #{tpu_custom_call.1} parent=1 // pred_fallthru
      _
    %s48 = sadd.s32 0, 0
    %p49 = scmp.lt.s32.totalorder %s48, 0
    %s50 = scalar_select %p49, %s48, 0
    %s51 = sadd.s32 0, 0
    %p52 = scmp.lt.s32.totalorder %s51, 0
    %s53 = scalar_select %p52, %s51, 0
    %p54 = scmp.eq.s32.totalorder 0, 0
    // Predicated region
    $region18: #{tpu_custom_call.1} parent=1 // pred_check
      %p55 = pneg %p54
    $region19: #{tpu_custom_call.1} parent=1 // pred_check_branch
      %57 = sbr.rel (%p55) target = $region21
    $region20: #{tpu_custom_call.1} parent=1 // pred_region
      %58 = vst [vmem:[#allocation7] sm:$0xff] 0.0
      %59 = vst [vmem:[#allocation7 + $0x8] sm:$0xff] 0.0
    $region21: #{tpu_custom_call.1} parent=1 // pred_fallthru
      _
    %v60 = vld [vmem:[#allocation2] sm:$0xff]
    %v61 = vld [vmem:[#allocation2 + $0x8] sm:$0xff]
    %v62 = vld [vmem:[#allocation5] sm:$0xff]
    %v63 = vld [vmem:[#allocation5 + $0x8] sm:$0xff]
    %vm64 = vcmp.eq.f32.partialorder %v62, 1.0
    %vm65 = vcmp.eq.f32.partialorder %v63, 1.0
    %v66 = vsel %vm64, 0.25, 0.75
    %v67 = vsel %vm65, 0.25, 0.75
    %v68 = vsub.f32 1.0, %v60
    %v69 = vsub.f32 1.0, %v61
    %v70 = vsel %vm64, %v68, %v60
    %v71 = vsel %vm65, %v69, %v61
    %v72 = vmul.f32 %v70, %v70
    %v73 = vmul.f32 %v71, %v71
    %v74 = vmul.f32 %v66, %v72
    %v75 = vmul.f32 %v67, %v73
    %v76 = vadd.f32 %v60, 0.0001
    %v77 = vadd.f32 %v61, 0.0001
    %v78 = vlog2.pop %v76
    %v79 = vmul.f32 %v78, 0.6931472
    %v80 = vlog2.pop %v77
    %v81 = vmul.f32 %v80, 0.6931472
    %v82 = vmul.f32 %v62, %v79
    %v83 = vmul.f32 %v63, %v81
    %v84 = vsub.f32 1.0, %v62
    %v85 = vsub.f32 1.0, %v63
    %v86 = vadd.f32 %v68, 0.0001
    %v87 = vadd.f32 %v69, 0.0001
    %v88 = vlog2.pop %v86
    %v89 = vmul.f32 %v88, 0.6931472
    %v90 = vlog2.pop %v87
    %v91 = vmul.f32 %v90, 0.6931472
    %v92 = vmul.f32 %v84, %v89
    %v93 = vmul.f32 %v85, %v91
    %v94 = vadd.f32 %v82, %v92
    %v95 = vadd.f32 %v83, %v93
    %v96 = vsub.f32 0.0, %v94
    %v97 = vsub.f32 0.0, %v95
    %v98 = vmul.f32 %v74, %v96
    %v99 = vmul.f32 %v75, %v97
    %v100 = vld [vmem:[#allocation7] sm:$0xff]
    %v101 = vld [vmem:[#allocation7 + $0x8] sm:$0xff]
    %v102 = vadd.f32 %v100, %v98
    %v103 = vadd.f32 %v101, %v99
    %104 = vst [vmem:[#allocation7] sm:$0xff] %v102
    %105 = vst [vmem:[#allocation7 + $0x8] sm:$0xff] %v103
    // Predicated region
    $region22: #{tpu_custom_call.1} parent=1 // pred_check
      _
    $region23: #{tpu_custom_call.1} parent=1 // pred_check_branch
      %107 = sbr.rel (0) target = $region25
    $region24: #{tpu_custom_call.1} parent=1 // pred_region
      %s109 = ssub.s32 256, 256
      %110 = vsyncadd [#allocation4], %s109
      %s112 = sshll.u32 [#allocation7], 4
      %s113 = int_to_ptr.vmem [resolvable:$true] %s112
      %115 = dma.vmem_to_hbm [thread:$0]  %s113, 256, %s2, [#allocation4]
    $region25: #{tpu_custom_call.1} parent=1 // pred_fallthru
      _
    // Predicated region
    $region26: #{tpu_custom_call.1} parent=1 // pred_check
      _
    $region27: #{tpu_custom_call.1} parent=1 // pred_check_branch
      %117 = sbr.rel (0) target = $region29
    $region28: #{tpu_custom_call.1} parent=1 // pred_region
      %118 = dma.done [#allocation4], 256
    $region29: #{tpu_custom_call.1} parent=1 // pred_fallthru
      _
    %119 = vsyncpa [#allocation3], 1
    %120 = vsyncpa [#allocation6], 1
    %121 = vsyncpa [#allocation4], 1

</llo_original>
